<compile_context>
chip_gen: v6e
topology: v6e:2x2x1
jax: 0.10.0
libtpu: 0.0.40
codegen_flags: <defaults>
</compile_context>

<pallas_src>
import functools

import jax
import jax.numpy as jnp
from jax.experimental import pallas as pl
from jax.experimental.pallas import tpu as pltpu

_LANE = 128
_MAX_BLOCK_ROWS = 2048   # 2048 rows x 128 lanes x 4B = 1 MiB per f32 stream/buffer
_CHUNK_ROWS = 64         # inner accumulation chunk: 8 vregs per f32 operand


def _round_up(x, m):
    return (x + m - 1) // m * m


def _bce_kernel(*refs, block_rows, chunk_rows, valid_rows, needs_mask, has_mask):
    """One grid step: (block_rows, 128) slab -> bf16 neg-loss + (3,8,128) partials."""
    if has_mask:
        pred_ref, gt_ref, mask_ref, negloss_ref, part_ref = refs
    else:
        pred_ref, gt_ref, negloss_ref, part_ref = refs
        mask_ref = None

    n_chunks = block_rows // chunk_rows
    row0 = pl.program_id(0) * block_rows

    def body(c, carry):
        pos_loss_acc, pos_cnt_acc, neg_cnt_acc = carry
        r = pl.multiple_of(c * chunk_rows, chunk_rows)

        pred = pred_ref[pl.ds(r, chunk_rows), :].astype(jnp.float32)
        gt = gt_ref[pl.ds(r, chunk_rows), :].astype(jnp.float32)
        one_minus_gt = 1.0 - gt                      # reused by `negative` and log(1-p)

        # torch `.byte()` truncates toward zero; for the [0,1] values seen here
        # jnp.floor is identical (single VPU op, no int round-trip).
        if mask_ref is not None:
            m = mask_ref[pl.ds(r, chunk_rows), :].astype(jnp.float32)
            positive = jnp.floor(gt * m)
            negative = jnp.floor(one_minus_gt * m)
        else:
            positive = jnp.floor(gt)
            negative = jnp.floor(one_minus_gt)

        # torch binary_cross_entropy clamps the log terms at -100.
        log_p = jnp.maximum(jnp.log(pred), -100.0)
        log_1mp = jnp.maximum(jnp.log(1.0 - pred), -100.0)
        loss = -(gt * log_p + one_minus_gt * log_1mp)

        pos_loss = loss * positive
        neg_loss = loss * negative

        if needs_mask:
            # Last grid step may read past the end of the (rows, 128) array; the
            # out-of-range rows are garbage (possibly NaN after the log), so mask
            # every contribution with a select (NaN * 0 would still be NaN).
            row_idx = (jax.lax.broadcasted_iota(jnp.int32, (chunk_rows, _LANE), 0)
                       + (row0 + r))
            valid = row_idx < valid_rows
            pos_loss = jnp.where(valid, pos_loss, 0.0)
            neg_loss = jnp.where(valid, neg_loss, 0.0)
            positive = jnp.where(valid, positive, 0.0)
            negative = jnp.where(valid, negative, 0.0)

        # bf16 write-back halves the negative-loss HBM write traffic; chunk_rows is
        # a multiple of 16 so these are full packed (16,128) bf16 stores.
        negloss_ref[pl.ds(r, chunk_rows), :] = neg_loss.astype(jnp.bfloat16)

        # Reduce (chunk_rows,128) -> (8,128): pure sublane/VALU accumulation; the
        # single cross-lane/sublane reduce happens once, outside the kernel.
        def r8(x):
            return jnp.sum(x.reshape(chunk_rows // 8, 8, _LANE), axis=0)

        return (pos_loss_acc + r8(pos_loss),
                pos_cnt_acc + r8(positive),
                neg_cnt_acc + r8(negative))

    init = (jnp.zeros((8, _LANE), jnp.float32),
            jnp.zeros((8, _LANE), jnp.float32),
            jnp.zeros((8, _LANE), jnp.float32))
    pos_loss_acc, pos_cnt_acc, neg_cnt_acc = jax.lax.fori_loop(
        0, n_chunks, body, init, unroll=True)     # n_chunks <= 32 by construction

    part_ref[0, 0] = pos_loss_acc
    part_ref[0, 1] = pos_cnt_acc
    part_ref[0, 2] = neg_cnt_acc


def _pick_block_rows(rows):
    if rows <= 64:
        return 16                                   # one native bf16 tile minimum
    # >=4 grid steps for pipelining / megacore sharding, capped at the ~1 MiB knee.
    return min(_MAX_BLOCK_ROWS, _round_up(-(-rows // 4), 64))


def _run_bce_kernel(inputs_2d, rows, block_rows, chunk_rows):
    grid_n = -(-rows // block_rows)
    needs_mask = (rows % block_rows) != 0
    has_mask = len(inputs_2d) == 3

    kernel = functools.partial(
        _bce_kernel, block_rows=block_rows, chunk_rows=chunk_rows,
        valid_rows=rows, needs_mask=needs_mask, has_mask=has_mask)

    in_spec = pl.BlockSpec((block_rows, _LANE), lambda i: (i, 0))
    return pl.pallas_call(
        kernel,
        out_shape=(
            jax.ShapeDtypeStruct((rows, _LANE), jnp.bfloat16),       # neg losses
            jax.ShapeDtypeStruct((grid_n, 3, 8, _LANE), jnp.float32),  # partials
        ),
        grid_spec=pltpu.PrefetchScalarGridSpec(
            num_scalar_prefetch=0,
            grid=(grid_n,),
            in_specs=[in_spec] * len(inputs_2d),
            out_specs=(
                pl.BlockSpec((block_rows, _LANE), lambda i: (i, 0)),
                pl.BlockSpec((1, 3, 8, _LANE), lambda i: (i, 0, 0, 0)),
            ),
        ),
        compiler_params=pltpu.CompilerParams(
            dimension_semantics=("parallel",),
            vmem_limit_bytes=32 * 1024 * 1024,
        ),
    )(*inputs_2d)


@functools.partial(jax.jit, static_argnames=("negative_ratio", "eps"))
def bce_loss(pred, gt, mask=None, negative_ratio=3.0, eps=1e-6):
    """Matches BCELoss.forward(pred, gt, mask) from the PyTorch reference."""
    total = pred.size
    # Only pad up to the next lane multiple (and to one full 16x128 tile for tiny
    # inputs); lane-aligned inputs are passed through as a free bitcast reshape.
    padded_total = max(_round_up(total, _LANE), 16 * _LANE)
    pad = padded_total - total
    rows = padded_total // _LANE

    def _prep(x, pad_value):
        if pad:
            flat = x.reshape(-1)
            flat = jnp.concatenate(
                [flat, jnp.full((pad,), pad_value, flat.dtype)])
            return flat.reshape(rows, _LANE)
        return x.reshape(rows, _LANE)

    if mask is None:
        # gt = pred = 0.5 for padded elements gives floor(gt) = floor(1-gt) = 0,
        # so they contribute nothing to any count or loss term.
        inputs = (_prep(pred, 0.5), _prep(gt, 0.5))
    else:
        inputs = (_prep(pred, 0.5), _prep(gt, 0.0), _prep(mask, 0.0))

    block_rows = _pick_block_rows(rows)
    chunk_rows = min(_CHUNK_ROWS, block_rows)

    neg_loss, partials = _run_bce_kernel(inputs, rows, block_rows, chunk_rows)

    sums = jnp.sum(partials, axis=(0, 2, 3))
    pos_loss_sum, pos_count, neg_total = sums[0], sums[1], sums[2]

    # negative_count = min(int(sum(negative)), int(positive_count * ratio))
    neg_count = jnp.minimum(neg_total, jnp.floor(pos_count * negative_ratio))

    # Dynamic-k top-k sum: single ascending sort on bf16 keys (half the bandwidth
    # of f32 keys, no negate/reverse copies); top-k = tail of the ascending order.
    # Padded elements are exact zeros, i.e. the minimum possible value, so they
    # only extend the bottom of the order and never perturb the top-k sum.
    neg_flat = neg_loss.reshape(-1)
    n = neg_flat.size
    neg_sorted = jnp.sort(neg_flat)
    idx = jnp.arange(n, dtype=jnp.int32)
    k = neg_count.astype(jnp.int32)
    topk_sum = jnp.sum(
        jnp.where(idx >= n - k, neg_sorted.astype(jnp.float32), 0.0))

    return (pos_loss_sum + topk_sum) / (pos_count + neg_count + eps)


def _bce_reference(pred, gt, mask=None, negative_ratio=3.0, eps=1e-6):
    """Pure-JAX f32 reference matching the PyTorch module."""
    if mask is None:
        mask = jnp.ones_like(gt)
    positive = jnp.floor(gt * mask)
    negative = jnp.floor((1.0 - gt) * mask)
    pos_count = jnp.sum(positive)
    neg_count = jnp.minimum(jnp.sum(negative),
                            jnp.floor(pos_count * negative_ratio))
    loss = -(gt * jnp.maximum(jnp.log(pred), -100.0)
             + (1.0 - gt) * jnp.maximum(jnp.log(1.0 - pred), -100.0))
    pos_loss = jnp.sum(loss * positive)
    neg_flat = (loss * negative).reshape(-1)
    neg_sorted = -jnp.sort(-neg_flat)
    idx = jnp.arange(neg_flat.size, dtype=jnp.int32)
    topk = jnp.sum(jnp.where(idx < neg_count.astype(jnp.int32), neg_sorted, 0.0))
    return (pos_loss + topk) / (pos_count + neg_count + eps)


if __name__ == "__main__":
    key = jax.random.PRNGKey(0)
    k1, k2, k3, k4, k5, k6 = jax.random.split(key, 6)

    # Shapes implied by the forward: prediction / gt probability maps, NCHW.
    N, C, H, W = 2, 4, 16, 16
    pred = jax.random.uniform(k1, (N, C, H, W), jnp.float32,
                              minval=0.01, maxval=0.99)
    gt = jax.random.bernoulli(k2, 0.3, (N, C, H, W)).astype(jnp.float32)
    mask = jax.random.bernoulli(k3, 0.8, (N, C, H, W)).astype(jnp.float32)

    out_nomask = bce_loss(pred, gt)          # mask=None (2-input kernel)
    out_masked = bce_loss(pred, gt, mask)    # masked (3-input kernel)

    # Ragged, non-lane-aligned shape exercises the in-kernel tail-mask path and
    # a multi-step grid with a partial boundary block.
    shape2 = (2, 3, 17, 23)
    pred2 = jax.random.uniform(k4, shape2, jnp.float32, minval=0.01, maxval=0.99)
    gt2 = jax.random.bernoulli(k5, 0.3, shape2).astype(jnp.float32)
    mask2 = jax.random.bernoulli(k6, 0.8, shape2).astype(jnp.float32)
    out_ragged = bce_loss(pred2, gt2, mask2)

    jax.block_until_ready((out_nomask, out_masked, out_ragged))

    assert out_nomask.shape == () and jnp.isfinite(out_nomask)
    assert out_masked.shape == () and jnp.isfinite(out_masked)
    assert out_ragged.shape == () and jnp.isfinite(out_ragged)

    ref_nomask = _bce_reference(pred, gt)
    ref_masked = _bce_reference(pred, gt, mask)
    ref_ragged = _bce_reference(pred2, gt2, mask2)
    # bf16 write-back of the negative losses allows ~0.5% relative drift on the
    # top-k term; counts and the positive-loss sum are exact f32.
    assert jnp.allclose(out_nomask, ref_nomask, rtol=2e-2, atol=1e-3)
    assert jnp.allclose(out_masked, ref_masked, rtol=2e-2, atol=1e-3)
    assert jnp.allclose(out_ragged, ref_ragged, rtol=2e-2, atol=1e-3)

    print("KERNEL_OK")
</pallas_src>

<mosaic_0001>
module attributes {stable_mosaic.version = 11 : i64} {
  func.func @_bce_kernel(%arg0: i32, %arg1: memref<16x128xf32, #tpu.memory_space<vmem>>, %arg2: memref<16x128xf32, #tpu.memory_space<vmem>>, %arg3: memref<16x128xbf16, #tpu.memory_space<vmem>>, %arg4: memref<1x3x8x128xf32, #tpu.memory_space<vmem>>) attributes {dimension_semantics = [#tpu.dimension_semantics<parallel>], iteration_bounds = array<i64: 1>, scalar_prefetch = 0 : i64, scratch_operands = 0 : i64, tpu.core_type = #tpu.core_type<tc>, window_params = [{transform_indices = @transform_0, window_bounds = array<i64: 16, 128>}, {transform_indices = @transform_1, window_bounds = array<i64: 16, 128>}, {transform_indices = @transform_2, window_bounds = array<i64: 16, 128>}, {transform_indices = @transform_3, window_bounds = array<i64: 1, 3, 8, 128>}]} {
    %cst = arith.constant 0.000000e+00 : f32
    %0 = vector.broadcast %cst : f32 to vector<8x128xf32>
    %cst_0 = arith.constant 0.000000e+00 : f32
    %1 = vector.broadcast %cst_0 : f32 to vector<8x128xf32>
    %cst_1 = arith.constant 0.000000e+00 : f32
    %2 = vector.broadcast %cst_1 : f32 to vector<8x128xf32>
    %c0_i32 = arith.constant 0 : i32
    %c16_i32 = arith.constant 16 : i32
    %3 = arith.muli %c0_i32, %c16_i32 : i32
    %4 = tpu.assume_multiple %3, 16 : i32
    %5 = arith.index_cast %4 : i32 to index
    %c0 = arith.constant 0 : index
    %6 = vector.load %arg1[%5, %c0] : memref<16x128xf32, #tpu.memory_space<vmem>>, vector<16x128xf32>
    %7 = arith.index_cast %4 : i32 to index
    %c0_2 = arith.constant 0 : index
    %8 = vector.load %arg2[%7, %c0_2] : memref<16x128xf32, #tpu.memory_space<vmem>>, vector<16x128xf32>
    %cst_3 = arith.constant 1.000000e+00 : f32
    %9 = vector.broadcast %cst_3 : f32 to vector<16x128xf32>
    %10 = arith.subf %9, %8 : vector<16x128xf32>
    %11 = math.floor %8 : vector<16x128xf32>
    %12 = math.floor %10 : vector<16x128xf32>
    %13 = math.log %6 : vector<16x128xf32>
    %cst_4 = arith.constant -1.000000e+02 : f32
    %14 = vector.broadcast %cst_4 : f32 to vector<16x128xf32>
    %15 = arith.maximumf %13, %14 : vector<16x128xf32>
    %cst_5 = arith.constant 1.000000e+00 : f32
    %16 = vector.broadcast %cst_5 : f32 to vector<16x128xf32>
    %17 = arith.subf %16, %6 : vector<16x128xf32>
    %18 = math.log %17 : vector<16x128xf32>
    %cst_6 = arith.constant -1.000000e+02 : f32
    %19 = vector.broadcast %cst_6 : f32 to vector<16x128xf32>
    %20 = arith.maximumf %18, %19 : vector<16x128xf32>
    %21 = arith.mulf %8, %15 : vector<16x128xf32>
    %22 = arith.mulf %10, %20 : vector<16x128xf32>
    %23 = arith.addf %21, %22 : vector<16x128xf32>
    %cst_7 = arith.constant 0.000000e+00 : f32
    %24 = vector.broadcast %cst_7 : f32 to vector<16x128xf32>
    %25 = arith.subf %24, %23 : vector<16x128xf32>
    %26 = arith.mulf %25, %11 : vector<16x128xf32>
    %27 = arith.mulf %25, %12 : vector<16x128xf32>
    %28 = arith.truncf %27 : vector<16x128xf32> to vector<16x128xbf16>
    %29 = arith.index_cast %4 : i32 to index
    %c0_8 = arith.constant 0 : index
    %30 = vector.load %arg3[%29, %c0_8] : memref<16x128xbf16, #tpu.memory_space<vmem>>, vector<16x128xbf16>
    tpu.vector_store %arg3[%29, %c0_8], %28 {strides = array<i32>} : memref<16x128xbf16, #tpu.memory_space<vmem>>, vector<16x128xbf16>,
    %31 = vector.shape_cast %26 : vector<16x128xf32> to vector<2x8x128xf32>
    %cst_9 = arith.constant dense<0.000000e+00> : vector<8x128xf32>
    %32 = vector.multi_reduction <add>, %31, %cst_9 [0] : vector<2x8x128xf32> to vector<8x128xf32>
    %33 = arith.addf %0, %32 : vector<8x128xf32>
    %34 = vector.shape_cast %11 : vector<16x128xf32> to vector<2x8x128xf32>
    %cst_10 = arith.constant dense<0.000000e+00> : vector<8x128xf32>
    %35 = vector.multi_reduction <add>, %34, %cst_10 [0] : vector<2x8x128xf32> to vector<8x128xf32>
    %36 = arith.addf %1, %35 : vector<8x128xf32>
    %37 = vector.shape_cast %12 : vector<16x128xf32> to vector<2x8x128xf32>
    %cst_11 = arith.constant dense<0.000000e+00> : vector<8x128xf32>
    %38 = vector.multi_reduction <add>, %37, %cst_11 [0] : vector<2x8x128xf32> to vector<8x128xf32>
    %39 = arith.addf %2, %38 : vector<8x128xf32>
    %c1_i32 = arith.constant 1 : i32
    %c0_12 = arith.constant 0 : index
    %c0_13 = arith.constant 0 : index
    %c0_14 = arith.constant 0 : index
    %c0_15 = arith.constant 0 : index
    %40 = vector.load %arg4[%c0_12, %c0_13, %c0_14, %c0_15] : memref<1x3x8x128xf32, #tpu.memory_space<vmem>>, vector<1x1x8x128xf32>
    %41 = vector.shape_cast %40 : vector<1x1x8x128xf32> to vector<8x128xf32>
    %42 = vector.shape_cast %33 : vector<8x128xf32> to vector<1x1x8x128xf32>
    tpu.vector_store %arg4[%c0_12, %c0_13, %c0_14, %c0_15], %42 {strides = array<i32>} : memref<1x3x8x128xf32, #tpu.memory_space<vmem>>, vector<1x1x8x128xf32>,
    %c0_16 = arith.constant 0 : index
    %c1 = arith.constant 1 : index
    %c0_17 = arith.constant 0 : index
    %c0_18 = arith.constant 0 : index
    %43 = vector.load %arg4[%c0_16, %c1, %c0_17, %c0_18] : memref<1x3x8x128xf32, #tpu.memory_space<vmem>>, vector<1x1x8x128xf32>
    %44 = vector.shape_cast %43 : vector<1x1x8x128xf32> to vector<8x128xf32>
    %45 = vector.shape_cast %36 : vector<8x128xf32> to vector<1x1x8x128xf32>
    tpu.vector_store %arg4[%c0_16, %c1, %c0_17, %c0_18], %45 {strides = array<i32>} : memref<1x3x8x128xf32, #tpu.memory_space<vmem>>, vector<1x1x8x128xf32>,
    %c0_19 = arith.constant 0 : index
    %c2 = arith.constant 2 : index
    %c0_20 = arith.constant 0 : index
    %c0_21 = arith.constant 0 : index
    %46 = vector.load %arg4[%c0_19, %c2, %c0_20, %c0_21] : memref<1x3x8x128xf32, #tpu.memory_space<vmem>>, vector<1x1x8x128xf32>
    %47 = vector.shape_cast %46 : vector<1x1x8x128xf32> to vector<8x128xf32>
    %48 = vector.shape_cast %39 : vector<8x128xf32> to vector<1x1x8x128xf32>
    tpu.vector_store %arg4[%c0_19, %c2, %c0_20, %c0_21], %48 {strides = array<i32>} : memref<1x3x8x128xf32, #tpu.memory_space<vmem>>, vector<1x1x8x128xf32>,
    return
  }
  func.func @transform_0(%arg0: i32) -> (i32, i32) {
    %c0_i32 = arith.constant 0 : i32
    %c0_i32_0 = arith.constant 0 : i32
    return %arg0, %c0_i32 : i32, i32
  }
  func.func @transform_1(%arg0: i32) -> (i32, i32) {
    %c0_i32 = arith.constant 0 : i32
    %c0_i32_0 = arith.constant 0 : i32
    return %arg0, %c0_i32 : i32, i32
  }
  func.func @transform_2(%arg0: i32) -> (i32, i32) {
    %c0_i32 = arith.constant 0 : i32
    %c0_i32_0 = arith.constant 0 : i32
    return %arg0, %c0_i32 : i32, i32
  }
  func.func @transform_3(%arg0: i32) -> (i32, i32, i32, i32) {
    %c0_i32 = arith.constant 0 : i32
    %c0_i32_0 = arith.constant 0 : i32
    %c0_i32_1 = arith.constant 0 : i32
    %c0_i32_2 = arith.constant 0 : i32
    return %arg0, %c0_i32, %c0_i32_0, %c0_i32_1 : i32, i32, i32, i32
  }
}

</mosaic_0001>

<llo_original>
// kernel: bce_loss.1
$region0: #{bce_loss.1}
  #allocation0 [shape = 'u32[]', space=smem, size = 0x4, offset = 0x4, fixed_abs, tag = 'smem constant byte address 0x4 - core index']
  #allocation1 [shape = 'u32[144,128]{1,0:T(1,128)}', space=vmem, size = 0x12000, scoped, tag = 'internal scratch']
  %s0 = inlined_call_operand.vmem [shape: f32[16,128], index: 0, kind: input, shape index: {}]
  %s1 = inlined_call_operand.vmem [shape: f32[16,128], index: 1, kind: input, shape index: {}]
  %s2 = inlined_call_operand.vmem [shape: bf16[16,128], index: 2, kind: output, shape index: {0}]
  %s3 = inlined_call_operand.vmem [shape: f32[1,3,8,128], index: 3, kind: output, shape index: {1}]
  %4 = xla_tuple %s2, %s3
  %s5 = sld [smem:[#allocation0]]
  $region26: #{bce_loss.1} parent=0
    _
  %s7 = ssub.s32 1, %s5
  %s8 = scalar_select 0, %s7, %s5
  // Predicated region
  $region2: #{bce_loss.1} parent=0 // pred_check
    _
  $region3: #{bce_loss.1} parent=0 // pred_check_branch
    %10 = sbr.rel (0) target = $region5
  $region4: #{bce_loss.1} parent=0 // pred_region
    _
  $region5: #{bce_loss.1} parent=0 // pred_fallthru
    _
  // Predicated region
  $region6: #{bce_loss.1} parent=0 // pred_check
    _
  $region7: #{bce_loss.1} parent=0 // pred_check_branch
    %12 = sbr.rel (0) target = $region9
  $region8: #{bce_loss.1} parent=0 // pred_region
    _
  $region9: #{bce_loss.1} parent=0 // pred_fallthru
    _
  %v13 = vld [vmem:[%s0] sm:$0xff]
  %v14 = vld [vmem:[%s0 + $0x8] sm:$0xff]
  %v15 = vld [vmem:[%s1] sm:$0xff]
  %v16 = vld [vmem:[%s1 + $0x8] sm:$0xff]
  %v17 = vsub.f32 1.0, %v15
  %v18 = vsub.f32 1.0, %v16
  %v19 = vfloor.f32 %v15
  %v20 = vfloor.f32 %v16
  %v21 = vfloor.f32 %v17
  %v22 = vfloor.f32 %v18
  %v23 = vlog2.pop %v13
  %v24 = vmul.f32 %v23, 0.6931472
  %v25 = vlog2.pop %v14
  %v26 = vmul.f32 %v25, 0.6931472
  %v27 = vmax.f32 %v24, -100.0
  %v28 = vmax.f32 %v26, -100.0
  %v29 = vsub.f32 1.0, %v13
  %v30 = vsub.f32 1.0, %v14
  %v31 = vlog2.pop %v29
  %v32 = vmul.f32 %v31, 0.6931472
  %v33 = vlog2.pop %v30
  %v34 = vmul.f32 %v33, 0.6931472
  %v35 = vmax.f32 %v32, -100.0
  %v36 = vmax.f32 %v34, -100.0
  %v37 = vmul.f32 %v15, %v27
  %v38 = vmul.f32 %v16, %v28
  %v39 = vmul.f32 %v17, %v35
  %v40 = vmul.f32 %v18, %v36
  %v41 = vadd.f32 %v37, %v39
  %v42 = vadd.f32 %v38, %v40
  %v43 = vsub.f32 0.0, %v41
  %v44 = vsub.f32 0.0, %v42
  %v45 = vmul.f32 %v43, %v19
  %v46 = vmul.f32 %v44, %v20
  %v47 = vmul.f32 %v43, %v21
  %v48 = vmul.f32 %v44, %v22
  %v49 = vpack.c.bf16 %v48, %v47
  %v51 = vunpack.c.l.b16 %v49
  %v52 = vunpack.c.h.b16 %v49
  %v53 = vpack.c.b16 %v51, %v51
  %v54 = vpack.c.b16 %v52, %v52
  %57 = vst [vmem:[%s2] sm:$0xf] %v53
  %58 = vst [vmem:[%s2 + $0x4] sm:$0xf] %v54
  %v59 = vadd.f32 %v45, %v46
  %v60 = vadd.f32 %v59, 0.0
  %v61 = vadd.f32 %v19, %v20
  %v62 = vadd.f32 %v61, 0.0
  %v63 = vadd.f32 %v21, %v22
  %v64 = vadd.f32 %v63, 0.0
  %65 = vst [vmem:[%s3] sm:$0xff] %v60
  %s66 = scalar_lea.vmem %s3, 8
  %67 = vst [vmem:[%s66] sm:$0xff] %v62
  %s68 = scalar_lea.vmem %s3, 16
  %69 = vst [vmem:[%s68] sm:$0xff] %v64
  // Predicated region
  $region10: #{bce_loss.1} parent=0 // pred_check
    _
  $region11: #{bce_loss.1} parent=0 // pred_check_branch
    %71 = sbr.rel (0) target = $region13
  $region12: #{bce_loss.1} parent=0 // pred_region
    _
  $region13: #{bce_loss.1} parent=0 // pred_fallthru
    _
  // Predicated region
  $region14: #{bce_loss.1} parent=0 // pred_check
    _
  $region15: #{bce_loss.1} parent=0 // pred_check_branch
    %73 = sbr.rel (0) target = $region17
  $region16: #{bce_loss.1} parent=0 // pred_region
    _
  $region17: #{bce_loss.1} parent=0 // pred_fallthru
    _
  // Predicated region
  $region18: #{bce_loss.1} parent=0 // pred_check
    _
  $region19: #{bce_loss.1} parent=0 // pred_check_branch
    %75 = sbr.rel (0) target = $region21
  $region20: #{bce_loss.1} parent=0 // pred_region
    _
  $region21: #{bce_loss.1} parent=0 // pred_fallthru
    _
  // Predicated region
  $region22: #{bce_loss.1} parent=0 // pred_check
    _
  $region23: #{bce_loss.1} parent=0 // pred_check_branch
    %77 = sbr.rel (0) target = $region25
  $region24: #{bce_loss.1} parent=0 // pred_region
    _
  $region25: #{bce_loss.1} parent=0 // pred_fallthru
    _

</llo_original>
